<compile_context>
chip_gen: v5e
topology: v5e:2x2
jax: 0.10.0
libtpu: 0.0.40
codegen_flags: <defaults>
</compile_context>

<pallas_src>
import functools

import jax
import jax.numpy as jnp
from jax.experimental import pallas as pl
from jax.experimental.pallas import tpu as pltpu


def _round_up(x, m):
    return ((x + m - 1) // m) * m


def _mlp_kernel(x_ref, w1_ref, w2_ref, w3_ref, b_ref, o_ref, *, hp, op):
    """Fused Linear->ReLU->Linear->ReLU->Linear on one batch tile."""
    cdt = w1_ref.dtype                     # compute dtype (f32 or bf16)
    b = b_ref[...]                         # (3, L) float32: rows b1 | b2 | b3
    # Layer 1: Linear + ReLU (f32 accumulate on MXU, elementwise in f32)
    h1 = jnp.dot(x_ref[...], w1_ref[...], preferred_element_type=jnp.float32)
    h1 = jnp.maximum(h1 + b[0:1, :hp], 0.0)
    # Layer 2: Linear + ReLU
    h2 = jnp.dot(h1.astype(cdt), w2_ref[...], preferred_element_type=jnp.float32)
    h2 = jnp.maximum(h2 + b[1:2, :hp], 0.0)
    # Layer 3: Linear (logits, no activation)
    out = jnp.dot(h2.astype(cdt), w3_ref[...], preferred_element_type=jnp.float32)
    o_ref[...] = (out + b[2:3, :op]).astype(o_ref.dtype)


def prepare_blob_params(params, dtype=jnp.float32):
    """Pads the model weights ONCE to TPU-friendly shapes.

    params: dict with w1 (F,H), b1 (H,), w2 (H,H), b2 (H,), w3 (H,O), b3 (O,)
    dtype:  compute dtype for weights/activations (float32 or bfloat16).
            Biases stay float32 (added on the f32 accumulator).
    Returns (padded_params_dict, meta) where meta = (F, H, O, Fp, Hp, Op).
    """
    w1, b1 = params["w1"], params["b1"]
    w2, b2 = params["w2"], params["b2"]
    w3, b3 = params["w3"], params["b3"]

    F, H = w1.shape
    O = w3.shape[1]

    Fp = _round_up(F, 8)     # sublane-only padding for the layer-1 contraction dim
    Hp = _round_up(H, 128)   # lane dims padded to 128 (vreg / MXU friendly)
    Op = _round_up(O, 128)
    L = max(Hp, Op)

    w1_p = jnp.zeros((Fp, Hp), dtype).at[:F, :H].set(w1.astype(dtype))
    w2_p = jnp.zeros((Hp, Hp), dtype).at[:H, :H].set(w2.astype(dtype))
    w3_p = jnp.zeros((Hp, Op), dtype).at[:H, :O].set(w3.astype(dtype))
    # Pack all three biases into a single operand (one DMA window, f32).
    b_p = (jnp.zeros((3, L), jnp.float32)
           .at[0, :H].set(b1.astype(jnp.float32))
           .at[1, :H].set(b2.astype(jnp.float32))
           .at[2, :O].set(b3.astype(jnp.float32)))

    padded = {"w1": w1_p, "w2": w2_p, "w3": w3_p, "b": b_p}
    meta = (int(F), int(H), int(O), int(Fp), int(Hp), int(Op))
    return padded, meta


@functools.partial(jax.jit, static_argnames=("meta",))
def blob_model_forward(x, padded, meta):
    """Fused 3-layer MLP forward.

    x:      (B, F) float array
    padded: output of prepare_blob_params
    meta:   static shape tuple from prepare_blob_params
    returns (B, O) float32 logits (matches the PyTorch module semantics).
    """
    F, H, O, Fp, Hp, Op = meta
    if x.shape[1] != F:
        raise ValueError(f"expected x with {F} features, got {x.shape}")

    w1_p, w2_p, w3_p, b_p = padded["w1"], padded["w2"], padded["w3"], padded["b"]
    cdt = w1_p.dtype
    B = x.shape[0]
    L = b_p.shape[1]

    # Batch tile: track the real batch for small B; cap for large B so the grid
    # has multiple "parallel" steps (v7x 2-TC sharding) and VMEM stays tiny.
    if B <= 1024:
        block_b = _round_up(B, 8)
    else:
        block_b = 512
    Bp = _round_up(B, block_b)

    # Only the (cheap, tiny) activation pad happens per call.
    if (Bp, Fp) != (B, F) or x.dtype != cdt:
        x_p = jnp.zeros((Bp, Fp), cdt).at[:B, :F].set(x.astype(cdt))
    else:
        x_p = x

    grid = (Bp // block_b,)

    itemsize = jnp.dtype(cdt).itemsize
    flops = 2 * Bp * (Fp * Hp + Hp * Hp + Hp * Op)
    bytes_accessed = (
        x_p.size * itemsize
        + (w1_p.size + w2_p.size + w3_p.size) * itemsize
        + b_p.size * 4
        + Bp * Op * 4
    )

    kernel = functools.partial(_mlp_kernel, hp=Hp, op=Op)

    out_p = pl.pallas_call(
        kernel,
        out_shape=jax.ShapeDtypeStruct((Bp, Op), jnp.float32),
        grid_spec=pltpu.PrefetchScalarGridSpec(
            num_scalar_prefetch=0,
            grid=grid,
            in_specs=[
                pl.BlockSpec((block_b, Fp), lambda i: (i, 0)),  # x tile
                pl.BlockSpec((Fp, Hp), lambda i: (0, 0)),       # w1 (resident)
                pl.BlockSpec((Hp, Hp), lambda i: (0, 0)),       # w2 (resident)
                pl.BlockSpec((Hp, Op), lambda i: (0, 0)),       # w3 (resident)
                pl.BlockSpec((3, L), lambda i: (0, 0)),         # b1|b2|b3 packed
            ],
            out_specs=pl.BlockSpec((block_b, Op), lambda i: (i, 0)),
        ),
        compiler_params=pltpu.CompilerParams(
            dimension_semantics=("parallel",),
        ),
        cost_estimate=pl.CostEstimate(
            flops=flops, transcendentals=0, bytes_accessed=bytes_accessed),
    )(x_p, w1_p, w2_p, w3_p, b_p)

    # Slice padding off to return the module's (B, O) logits.
    return out_p[:B, :O]


def init_blob_model_params(key, input_features, output_features, hidden_units=8):
    """Deterministic init mirroring torch.nn.Linear default (U[-1/sqrt(fan_in), +])."""
    keys = jax.random.split(key, 6)

    def linear_init(kw, kb, fan_in, fan_out):
        bound = 1.0 / jnp.sqrt(jnp.float32(fan_in))
        w = jax.random.uniform(kw, (fan_in, fan_out), jnp.float32, -bound, bound)
        b = jax.random.uniform(kb, (fan_out,), jnp.float32, -bound, bound)
        return w, b

    w1, b1 = linear_init(keys[0], keys[1], input_features, hidden_units)
    w2, b2 = linear_init(keys[2], keys[3], hidden_units, hidden_units)
    w3, b3 = linear_init(keys[4], keys[5], hidden_units, output_features)
    return {"w1": w1, "b1": b1, "w2": w2, "b2": b2, "w3": w3, "b3": b3}


def _reference_forward(x, p):
    h1 = jnp.maximum(x @ p["w1"] + p["b1"], 0.0)
    h2 = jnp.maximum(h1 @ p["w2"] + p["b2"], 0.0)
    return h2 @ p["w3"] + p["b3"]


if __name__ == "__main__":
    # Shapes consistent with the module: 2 input features ("blobs" data),
    # 4 classes, hidden_units=8, batch=32.
    input_features, output_features, hidden_units = 2, 4, 8
    batch = 32

    key = jax.random.PRNGKey(0)
    k_x, k_p = jax.random.split(key)
    x = jax.random.normal(k_x, (batch, input_features), jnp.float32)
    params = init_blob_model_params(k_p, input_features, output_features, hidden_units)
    ref = _reference_forward(x, params)

    # float32 compute path (safe on all generations, tight tolerance).
    padded_f32, meta = prepare_blob_params(params, dtype=jnp.float32)
    out_f32 = jax.block_until_ready(blob_model_forward(x, padded_f32, meta=meta))
    assert out_f32.shape == (batch, output_features), out_f32.shape
    assert jnp.allclose(out_f32, ref, atol=1e-5, rtol=1e-5), "f32 mismatch vs reference"

    # bfloat16 weights/activations + f32 accumulate (v6e/v7x fast path).
    padded_bf16, meta_bf16 = prepare_blob_params(params, dtype=jnp.bfloat16)
    out_bf16 = jax.block_until_ready(blob_model_forward(x, padded_bf16, meta=meta_bf16))
    assert out_bf16.shape == (batch, output_features), out_bf16.shape
    assert jnp.allclose(out_bf16, ref, atol=5e-2, rtol=5e-2), "bf16 mismatch vs reference"

    print("KERNEL_OK")
</pallas_src>

<mosaic_0001>
module attributes {stable_mosaic.version = 11 : i64} {
  func.func @_mlp_kernel(%arg0: i32, %arg1: memref<32x8xf32, #tpu.memory_space<vmem>>, %arg2: memref<8x128xf32, #tpu.memory_space<vmem>>, %arg3: memref<128x128xf32, #tpu.memory_space<vmem>>, %arg4: memref<128x128xf32, #tpu.memory_space<vmem>>, %arg5: memref<3x128xf32, #tpu.memory_space<vmem>>, %arg6: memref<32x128xf32, #tpu.memory_space<vmem>>) attributes {dimension_semantics = [#tpu.dimension_semantics<parallel>], iteration_bounds = array<i64: 1>, scalar_prefetch = 0 : i64, scratch_operands = 0 : i64, tpu.core_type = #tpu.core_type<tc>, window_params = [{transform_indices = @transform_0, window_bounds = array<i64: 32, 8>}, {pipeline_mode = #tpu.pipeline_mode<synchronous>, transform_indices = @transform_1, window_bounds = array<i64: 8, 128>}, {pipeline_mode = #tpu.pipeline_mode<synchronous>, transform_indices = @transform_2, window_bounds = array<i64: 128, 128>}, {pipeline_mode = #tpu.pipeline_mode<synchronous>, transform_indices = @transform_3, window_bounds = array<i64: 128, 128>}, {pipeline_mode = #tpu.pipeline_mode<synchronous>, transform_indices = @transform_4, window_bounds = array<i64: 3, 128>}, {transform_indices = @transform_5, window_bounds = array<i64: 32, 128>}]} {
    %c0 = arith.constant 0 : index
    %c0_0 = arith.constant 0 : index
    %0 = vector.load %arg5[%c0, %c0_0] : memref<3x128xf32, #tpu.memory_space<vmem>>, vector<3x128xf32>
    %c0_1 = arith.constant 0 : index
    %c0_2 = arith.constant 0 : index
    %1 = vector.load %arg1[%c0_1, %c0_2] : memref<32x8xf32, #tpu.memory_space<vmem>>, vector<32x8xf32>
    %c0_3 = arith.constant 0 : index
    %c0_4 = arith.constant 0 : index
    %2 = vector.load %arg2[%c0_3, %c0_4] : memref<8x128xf32, #tpu.memory_space<vmem>>, vector<8x128xf32>
    %cst = arith.constant dense<0.000000e+00> : vector<32x128xf32>
    %3 = tpu.matmul %1, %2, %cst {dimension_numbers = #tpu.dot_dimension_numbers<[1], [0], [0], [1], [0, 0, 1, 1], [], []>} : vector<32x8xf32>, vector<8x128xf32>, vector<32x128xf32> -> vector<32x128xf32>
    %4 = vector.extract_strided_slice %0 {offsets = [0, 0], sizes = [1, 128], strides = [1, 1]} : vector<3x128xf32> to vector<1x128xf32>
    %5 = vector.broadcast %4 : vector<1x128xf32> to vector<32x128xf32>
    %6 = arith.addf %3, %5 : vector<32x128xf32>
    %cst_5 = arith.constant 0.000000e+00 : f32
    %7 = vector.broadcast %cst_5 : f32 to vector<32x128xf32>
    %8 = arith.maximumf %6, %7 : vector<32x128xf32>
    %c0_6 = arith.constant 0 : index
    %c0_7 = arith.constant 0 : index
    %9 = vector.load %arg3[%c0_6, %c0_7] : memref<128x128xf32, #tpu.memory_space<vmem>>, vector<128x128xf32>
    %cst_8 = arith.constant dense<0.000000e+00> : vector<32x128xf32>
    %10 = tpu.matmul %8, %9, %cst_8 {dimension_numbers = #tpu.dot_dimension_numbers<[1], [0], [0], [1], [0, 0, 1, 1], [], []>} : vector<32x128xf32>, vector<128x128xf32>, vector<32x128xf32> -> vector<32x128xf32>
    %11 = vector.extract_strided_slice %0 {offsets = [1, 0], sizes = [1, 128], strides = [1, 1]} : vector<3x128xf32> to vector<1x128xf32>
    %12 = vector.broadcast %11 : vector<1x128xf32> to vector<32x128xf32>
    %13 = arith.addf %10, %12 : vector<32x128xf32>
    %cst_9 = arith.constant 0.000000e+00 : f32
    %14 = vector.broadcast %cst_9 : f32 to vector<32x128xf32>
    %15 = arith.maximumf %13, %14 : vector<32x128xf32>
    %c0_10 = arith.constant 0 : index
    %c0_11 = arith.constant 0 : index
    %16 = vector.load %arg4[%c0_10, %c0_11] : memref<128x128xf32, #tpu.memory_space<vmem>>, vector<128x128xf32>
    %cst_12 = arith.constant dense<0.000000e+00> : vector<32x128xf32>
    %17 = tpu.matmul %15, %16, %cst_12 {dimension_numbers = #tpu.dot_dimension_numbers<[1], [0], [0], [1], [0, 0, 1, 1], [], []>} : vector<32x128xf32>, vector<128x128xf32>, vector<32x128xf32> -> vector<32x128xf32>
    %18 = vector.extract_strided_slice %0 {offsets = [2, 0], sizes = [1, 128], strides = [1, 1]} : vector<3x128xf32> to vector<1x128xf32>
    %19 = vector.broadcast %18 : vector<1x128xf32> to vector<32x128xf32>
    %20 = arith.addf %17, %19 : vector<32x128xf32>
    %c0_13 = arith.constant 0 : index
    %c0_14 = arith.constant 0 : index
    %21 = vector.load %arg6[%c0_13, %c0_14] : memref<32x128xf32, #tpu.memory_space<vmem>>, vector<32x128xf32>
    tpu.vector_store %arg6[%c0_13, %c0_14], %20 {strides = array<i32>} : memref<32x128xf32, #tpu.memory_space<vmem>>, vector<32x128xf32>,
    return
  }
  func.func @transform_0(%arg0: i32) -> (i32, i32) {
    %c0_i32 = arith.constant 0 : i32
    %c0_i32_0 = arith.constant 0 : i32
    return %arg0, %c0_i32 : i32, i32
  }
  func.func @transform_1(%arg0: i32) -> (i32, i32) {
    %c0_i32 = arith.constant 0 : i32
    %c0_i32_0 = arith.constant 0 : i32
    %c0_i32_1 = arith.constant 0 : i32
    return %c0_i32, %c0_i32_0 : i32, i32
  }
  func.func @transform_2(%arg0: i32) -> (i32, i32) {
    %c0_i32 = arith.constant 0 : i32
    %c0_i32_0 = arith.constant 0 : i32
    %c0_i32_1 = arith.constant 0 : i32
    return %c0_i32, %c0_i32_0 : i32, i32
  }
  func.func @transform_3(%arg0: i32) -> (i32, i32) {
    %c0_i32 = arith.constant 0 : i32
    %c0_i32_0 = arith.constant 0 : i32
    %c0_i32_1 = arith.constant 0 : i32
    return %c0_i32, %c0_i32_0 : i32, i32
  }
  func.func @transform_4(%arg0: i32) -> (i32, i32) {
    %c0_i32 = arith.constant 0 : i32
    %c0_i32_0 = arith.constant 0 : i32
    %c0_i32_1 = arith.constant 0 : i32
    return %c0_i32, %c0_i32_0 : i32, i32
  }
  func.func @transform_5(%arg0: i32) -> (i32, i32) {
    %c0_i32 = arith.constant 0 : i32
    %c0_i32_0 = arith.constant 0 : i32
    return %arg0, %c0_i32 : i32, i32
  }
}

</mosaic_0001>

<llo_original>
// kernel: blob_model_forward.1
$region0: #{blob_model_forward.1}
  #allocation0 [shape = 'u32[]', space=smem, size = 0x4, offset = 0x4, fixed_abs, tag = 'smem constant byte address 0x4 - core index']
  #allocation1 [shape = 'u32[72,128]{1,0:T(1,128)}', space=vmem, size = 0x9000, scoped, tag = 'internal scratch']
  %s0 = inlined_call_operand.vmem [shape: f32[32,8], index: 0, kind: input, shape index: {}]
  %s1 = inlined_call_operand.vmem [shape: f32[8,128], index: 1, kind: input, shape index: {}]
  %s2 = inlined_call_operand.vmem [shape: f32[128,128], index: 2, kind: input, shape index: {}]
  %s3 = inlined_call_operand.hbm [shape: f32[128,128], index: 3, kind: input, shape index: {}]
  %s4 = inlined_call_operand.vmem [shape: f32[3,128], index: 4, kind: input, shape index: {}]
  %s5 = inlined_call_operand.vmem [shape: f32[32,128], index: 5, kind: output, shape index: {}]
  %s6 = sld [smem:[#allocation0]]
  $region34: #{blob_model_forward.1} parent=0
    _
  %s8 = ssub.s32 1, %s6
  %s9 = scalar_select 0, %s8, %s6
  $region1: #{blob_model_forward.1} parent=0
    #allocation2 [shape = 'u8[65536]{0}', space=vmem, size = 0x10000, scoped, tag = 'input window, operand 3, single buffered']
    #allocation3 [shape = 's32[1]{0}', space=sflag, size = 0x4, scoped, tag = 'scoped memory for blob_model_forward.1']
    %10 = vsyncpa [#allocation3], 0
    // Predicated region
    $region2: #{blob_model_forward.1} parent=1 // pred_check
      _
    $region3: #{blob_model_forward.1} parent=1 // pred_check_branch
      %12 = sbr.rel (0) target = $region5
    $region4: #{blob_model_forward.1} parent=1 // pred_region
      _
    $region5: #{blob_model_forward.1} parent=1 // pred_fallthru
      _
    // Predicated region
    $region6: #{blob_model_forward.1} parent=1 // pred_check
      _
    $region7: #{blob_model_forward.1} parent=1 // pred_check_branch
      %14 = sbr.rel (0) target = $region9
    $region8: #{blob_model_forward.1} parent=1 // pred_region
      _
    $region9: #{blob_model_forward.1} parent=1 // pred_fallthru
      _
    // Predicated region
    $region10: #{blob_model_forward.1} parent=1 // pred_check
      _
    $region11: #{blob_model_forward.1} parent=1 // pred_check_branch
      %16 = sbr.rel (0) target = $region13
    $region12: #{blob_model_forward.1} parent=1 // pred_region
      _
    $region13: #{blob_model_forward.1} parent=1 // pred_fallthru
      _
    // Predicated region
    $region14: #{blob_model_forward.1} parent=1 // pred_check
      _
    $region15: #{blob_model_forward.1} parent=1 // pred_check_branch
      %18 = sbr.rel (0) target = $region17
    $region16: #{blob_model_forward.1} parent=1 // pred_region
      %20 = vsyncadd [#allocation3], 0
      %s21 = sshll.u32 %s3, 4
      %s22 = int_to_ptr.hbm [resolvable:$true] %s21
      %s23 = sshll.u32 [#allocation2], 4
      %s24 = int_to_ptr.vmem [resolvable:$true] %s23
      %29 = dma.hbm_to_vmem [thread:$0]  %s22, 2048, %s24, [#allocation3], 128, 128, 8
    $region17: #{blob_model_forward.1} parent=1 // pred_fallthru
      _
    // Predicated region
    $region18: #{blob_model_forward.1} parent=1 // pred_check
      _
    $region19: #{blob_model_forward.1} parent=1 // pred_check_branch
      %31 = sbr.rel (0) target = $region21
    $region20: #{blob_model_forward.1} parent=1 // pred_region
      _
    $region21: #{blob_model_forward.1} parent=1 // pred_fallthru
      _
    // Predicated region
    $region22: #{blob_model_forward.1} parent=1 // pred_check
      _
    $region23: #{blob_model_forward.1} parent=1 // pred_check_branch
      %33 = sbr.rel (0) target = $region25
    $region24: #{blob_model_forward.1} parent=1 // pred_region
      %35 = dma.done [#allocation3], 2048
    $region25: #{blob_model_forward.1} parent=1 // pred_fallthru
      _
    %v36 = vld [vmem:[%s4] sm:$0x7]
    %v37 = vld [vmem:[%s0] sm:$0xff]
    %v38 = vld [vmem:[%s0 + $0x8] sm:$0xff]
    %v39 = vld [vmem:[%s0 + $0x10] sm:$0xff]
    %v40 = vld [vmem:[%s0 + $0x18] sm:$0xff]
    %v41 = vld [vmem:[%s1] sm:$0xff]
    %v42 = vperm.slane %v36, 0
    %vm43 = vcmask 64512
    %v45 = vsel %vm43, %v37, 0
    %v48 = vsel %vm43, %v38, 0
    %v51 = vsel %vm43, %v39, 0
    %v54 = vsel %vm43, %v40, 0
    %56 = vmatpush.msra.mxu0 0.0
    %57 = vmatpush.msra.mxu0 0.0
    %58 = vmatpush.msra.mxu0 0.0
    %59 = vmatpush.msra.mxu0 0.0
    %60 = vmatpush.msra.mxu0 0.0
    %61 = vmatpush.msra.mxu0 0.0
    %62 = vmatpush.msra.mxu0 0.0
    %63 = vmatpush.msra.mxu0 0.0
    %64 = vmatpush.msra.mxu0 0.0
    %65 = vmatpush.msra.mxu0 0.0
    %66 = vmatpush.msra.mxu0 0.0
    %67 = vmatpush.msra.mxu0 0.0
    %68 = vmatpush.msra.mxu0 0.0
    %69 = vmatpush.msra.mxu0 0.0
    %70 = vmatpush.msra.mxu0 0.0
    %71 = vmatpush.msra.mxu0 %v41
    %72 = vmatmul.f32.gmra.mxu0 %v45
    %v73 = vpop.f32.mrf.mxu0
    %v74 = vadd.f32 %v42, %v73
    %75 = vmatmul.f32.gmra.mxu0 %v48
    %v76 = vpop.f32.mrf.mxu0
    %v77 = vadd.f32 %v42, %v76
    %78 = vmatmul.f32.gmra.mxu0 %v51
    %v79 = vpop.f32.mrf.mxu0
    %v80 = vadd.f32 %v42, %v79
    %81 = vmatmul.f32.gmra.mxu0 %v54
    %v82 = vpop.f32.mrf.mxu0
    %v83 = vadd.f32 %v42, %v82
    %84 = vdwg.mxu0
    %v85 = vmax.f32 %v74, 0.0
    %v86 = vmax.f32 %v77, 0.0
    %v87 = vmax.f32 %v80, 0.0
    %v88 = vmax.f32 %v83, 0.0
    %v89 = vld [vmem:[%s2] sm:$0xff]
    %v90 = vld [vmem:[%s2 + $0x8] sm:$0xff]
    %v91 = vld [vmem:[%s2 + $0x10] sm:$0xff]
    %v92 = vld [vmem:[%s2 + $0x18] sm:$0xff]
    %v93 = vld [vmem:[%s2 + $0x20] sm:$0xff]
    %v94 = vld [vmem:[%s2 + $0x28] sm:$0xff]
    %v95 = vld [vmem:[%s2 + $0x30] sm:$0xff]
    %v96 = vld [vmem:[%s2 + $0x38] sm:$0xff]
    %v97 = vld [vmem:[%s2 + $0x40] sm:$0xff]
    %v98 = vld [vmem:[%s2 + $0x48] sm:$0xff]
    %v99 = vld [vmem:[%s2 + $0x50] sm:$0xff]
    %v100 = vld [vmem:[%s2 + $0x58] sm:$0xff]
    %v101 = vld [vmem:[%s2 + $0x60] sm:$0xff]
    %v102 = vld [vmem:[%s2 + $0x68] sm:$0xff]
    %v103 = vld [vmem:[%s2 + $0x70] sm:$0xff]
    %v104 = vld [vmem:[%s2 + $0x78] sm:$0xff]
    %v105 = vperm.slane %v36, 1
    %106 = vmatpush.msra.mxu0 %v104
    %107 = vmatpush.msra.mxu0 %v103
    %108 = vmatpush.msra.mxu0 %v102
    %109 = vmatpush.msra.mxu0 %v101
    %110 = vmatpush.msra.mxu0 %v100
    %111 = vmatpush.msra.mxu0 %v99
    %112 = vmatpush.msra.mxu0 %v98
    %113 = vmatpush.msra.mxu0 %v97
    %114 = vmatpush.msra.mxu0 %v96
    %115 = vmatpush.msra.mxu0 %v95
    %116 = vmatpush.msra.mxu0 %v94
    %117 = vmatpush.msra.mxu0 %v93
    %118 = vmatpush.msra.mxu0 %v92
    %119 = vmatpush.msra.mxu0 %v91
    %120 = vmatpush.msra.mxu0 %v90
    %121 = vmatpush.msra.mxu0 %v89
    %122 = vmatmul.f32.gmra.mxu0 %v85
    %v123 = vpop.f32.mrf.mxu0
    %v124 = vadd.f32 %v105, %v123
    %125 = vmatmul.f32.gmra.mxu0 %v86
    %v126 = vpop.f32.mrf.mxu0
    %v127 = vadd.f32 %v105, %v126
    %128 = vmatmul.f32.gmra.mxu0 %v87
    %v129 = vpop.f32.mrf.mxu0
    %v130 = vadd.f32 %v105, %v129
    %131 = vmatmul.f32.gmra.mxu0 %v88
    %v132 = vpop.f32.mrf.mxu0
    %v133 = vadd.f32 %v105, %v132
    %134 = vdwg.mxu0
    %v135 = vmax.f32 %v124, 0.0
    %v136 = vmax.f32 %v127, 0.0
    %v137 = vmax.f32 %v130, 0.0
    %v138 = vmax.f32 %v133, 0.0
    %v139 = vld [vmem:[#allocation2] sm:$0xff]
    %v140 = vld [vmem:[#allocation2 + $0x8] sm:$0xff]
    %v141 = vld [vmem:[#allocation2 + $0x10] sm:$0xff]
    %v142 = vld [vmem:[#allocation2 + $0x18] sm:$0xff]
    %v143 = vld [vmem:[#allocation2 + $0x20] sm:$0xff]
    %v144 = vld [vmem:[#allocation2 + $0x28] sm:$0xff]
    %v145 = vld [vmem:[#allocation2 + $0x30] sm:$0xff]
    %v146 = vld [vmem:[#allocation2 + $0x38] sm:$0xff]
    %v147 = vld [vmem:[#allocation2 + $0x40] sm:$0xff]
    %v148 = vld [vmem:[#allocation2 + $0x48] sm:$0xff]
    %v149 = vld [vmem:[#allocation2 + $0x50] sm:$0xff]
    %v150 = vld [vmem:[#allocation2 + $0x58] sm:$0xff]
    %v151 = vld [vmem:[#allocation2 + $0x60] sm:$0xff]
    %v152 = vld [vmem:[#allocation2 + $0x68] sm:$0xff]
    %v153 = vld [vmem:[#allocation2 + $0x70] sm:$0xff]
    %v154 = vld [vmem:[#allocation2 + $0x78] sm:$0xff]
    %v155 = vperm.slane %v36, 2
    %156 = vmatpush.msra.mxu0 %v154
    %157 = vmatpush.msra.mxu0 %v153
    %158 = vmatpush.msra.mxu0 %v152
    %159 = vmatpush.msra.mxu0 %v151
    %160 = vmatpush.msra.mxu0 %v150
    %161 = vmatpush.msra.mxu0 %v149
    %162 = vmatpush.msra.mxu0 %v148
    %163 = vmatpush.msra.mxu0 %v147
    %164 = vmatpush.msra.mxu0 %v146
    %165 = vmatpush.msra.mxu0 %v145
    %166 = vmatpush.msra.mxu0 %v144
    %167 = vmatpush.msra.mxu0 %v143
    %168 = vmatpush.msra.mxu0 %v142
    %169 = vmatpush.msra.mxu0 %v141
    %170 = vmatpush.msra.mxu0 %v140
    %171 = vmatpush.msra.mxu0 %v139
    %172 = vmatmul.f32.gmra.mxu0 %v135
    %v173 = vpop.f32.mrf.mxu0
    %v174 = vadd.f32 %v155, %v173
    %175 = vmatmul.f32.gmra.mxu0 %v136
    %v176 = vpop.f32.mrf.mxu0
    %v177 = vadd.f32 %v155, %v176
    %178 = vmatmul.f32.gmra.mxu0 %v137
    %v179 = vpop.f32.mrf.mxu0
    %v180 = vadd.f32 %v155, %v179
    %181 = vmatmul.f32.gmra.mxu0 %v138
    %v182 = vpop.f32.mrf.mxu0
    %v183 = vadd.f32 %v155, %v182
    %184 = vdwg.mxu0
    %185 = vst [vmem:[%s5] sm:$0xff] %v174
    %186 = vst [vmem:[%s5 + $0x8] sm:$0xff] %v177
    %187 = vst [vmem:[%s5 + $0x10] sm:$0xff] %v180
    %188 = vst [vmem:[%s5 + $0x18] sm:$0xff] %v183
    // Predicated region
    $region26: #{blob_model_forward.1} parent=1 // pred_check
      _
    $region27: #{blob_model_forward.1} parent=1 // pred_check_branch
      %190 = sbr.rel (0) target = $region29
    $region28: #{blob_model_forward.1} parent=1 // pred_region
      _
    $region29: #{blob_model_forward.1} parent=1 // pred_fallthru
      _
    // Predicated region
    $region30: #{blob_model_forward.1} parent=1 // pred_check
      _
    $region31: #{blob_model_forward.1} parent=1 // pred_check_branch
      %192 = sbr.rel (0) target = $region33
    $region32: #{blob_model_forward.1} parent=1 // pred_region
      _
    $region33: #{blob_model_forward.1} parent=1 // pred_fallthru
      _
    %193 = vsyncpa [#allocation3], 1

</llo_original>
